<compile_context>
chip_gen: v5e
topology: v5e:2x2
jax: 0.10.0
libtpu: 0.0.40
codegen_flags: <defaults>
</compile_context>

<pallas_src>
import jax
import jax.numpy as jnp
from jax import lax
from jax.experimental import pallas as pl
from jax.experimental.pallas import tpu as pltpu


_PCOLS = 32  # packed parameter tile width (27 columns used, padded to 32)


def mlp_kernel(x_ref, p_ref, o_ref):
    # x_ref: (tb, 8) f32  batch-major input block, straight from HBM
    # p_ref: (8, 32) f32  packed weights/biases (constant index_map -> resident)
    # o_ref: (1, tb) f32  lane-dense output row (batch on lanes)
    x = x_ref[...]
    p = p_ref[...]

    # Static slices of the packed parameter tile.  Zero padding is arranged so
    # the padded activation rows (sigmoid(0) = 0.5) never contribute.
    w1 = p[:, 0:8]         # (8, 8): rows 0..5 = linear1.weight, rows 6..7 = 0
    w2 = p[:, 8:16]        # (8, 8): [0:4, 0:6] = linear2.weight, rest 0
    w3 = p[0:1, 16:24]     # (1, 8): cols 0..3 = linear3.weight, rest 0
    b1 = p[:, 24:25]       # (8, 1): rows 0..5 = linear1.bias, rest 0
    b2 = p[:, 25:26]       # (8, 1): rows 0..3 = linear2.bias, rest 0
    b3 = p[0:1, 26:27]     # (1, 1): linear3.bias

    # Layer 1 on the MXU.  Contracting the feature axis of both operands
    # (w1[n, k] * x[i, k]) folds the x^T relayout into the matmul and yields a
    # feature-major (8, tb) activation directly.
    z1 = lax.dot_general(w1, x, (((1,), (1,)), ((), ())),
                         preferred_element_type=jnp.float32,
                         precision=lax.Precision.HIGHEST)          # (8, tb)
    h1 = jax.nn.sigmoid(z1 + b1)                                    # (8, tb)

    # Layers 2 and 3: small-LHS matmuls on the MXU; the batch/lane axis streams.
    z2 = jnp.dot(w2, h1, preferred_element_type=jnp.float32,
                 precision=lax.Precision.HIGHEST)                   # (8, tb)
    h2 = jax.nn.sigmoid(z2 + b2)                                    # (8, tb)

    z3 = jnp.dot(w3, h2, preferred_element_type=jnp.float32,
                 precision=lax.Precision.HIGHEST)                   # (1, tb)
    # jax.nn.sigmoid keeps exact parity with the reference; swapping the
    # division for pl.reciprocal(approx=True) is a further small EUP win but
    # needs a tolerance re-check first.
    o_ref[...] = jax.nn.sigmoid(z3 + b3).astype(o_ref.dtype)


def pack_params(params):
    """Pack all weights/biases into one (8, 32) f32 tile (single VMEM tile)."""
    p = jnp.zeros((8, _PCOLS), jnp.float32)
    p = p.at[0:6, 0:8].set(params["w1"].astype(jnp.float32))    # (6, 8)
    p = p.at[0:4, 8:14].set(params["w2"].astype(jnp.float32))   # (4, 6)
    p = p.at[0:1, 16:20].set(params["w3"].astype(jnp.float32))  # (1, 4)
    p = p.at[0:6, 24].set(params["b1"].astype(jnp.float32))     # (6,)
    p = p.at[0:4, 25].set(params["b2"].astype(jnp.float32))     # (4,)
    p = p.at[0:1, 26].set(params["b3"].astype(jnp.float32))     # (1,)
    return p


def _round_up(v, m):
    return ((v + m - 1) // m) * m


def model_c_forward(x, params, *, tb=8192):
    """x: (B, 8) float32 -> (B, 1) float32.

    tb = batch tile.  Default 8192 keeps the VMEM footprint (~10 MiB, since the
    (tb, 8) block lane-pads 8->128) under the v5e 16 MiB scoped default; raise
    it together with CompilerParams(vmem_limit_bytes=...) on v6e/v7x.
    """
    B = x.shape[0]
    assert x.shape == (B, 8), x.shape
    x = x.astype(jnp.float32)
    p = pack_params(params)

    if B < 128:
        # Single full-array block (block dims equal to array dims are legal
        # regardless of the (8, 128) divisibility rule).
        tb = B
    else:
        # Multiple of 128 (lane width), at most 8192 (v5e VMEM-safe), and small
        # enough that there are >=2 blocks whenever B >= 256 so the "parallel"
        # batch axis can shard across both v7x TensorCores.
        half = _round_up(pl.cdiv(B, 2), 128)
        tb = max(128, min((tb // 128) * 128, half, 8192))

    grid = (pl.cdiv(B, tb),)  # trailing partial block: reads padded, writes masked

    out = pl.pallas_call(
        mlp_kernel,
        out_shape=jax.ShapeDtypeStruct((1, B), jnp.float32),
        grid=grid,
        in_specs=[
            # x: (tb, 8) batch-major blocks marching down the batch axis.
            pl.BlockSpec((tb, 8), lambda i: (i, 0)),
            # packed params: constant index_map -> VMEM-resident across steps.
            pl.BlockSpec((8, _PCOLS), lambda i: (0, 0)),
        ],
        out_specs=pl.BlockSpec((1, tb), lambda i: (0, i)),
        compiler_params=pltpu.CompilerParams(
            dimension_semantics=("parallel",),   # megacore sharding on v7x
        ),
    )(x, p)

    # (1, B) and (B, 1) share the same linear layout -> free reshape.
    return out.reshape(B, 1)


def init_params(key):
    """PyTorch-style Linear params: weight (out, in), bias (out,)."""
    ks = jax.random.split(key, 6)

    def lin(kw, kb, fan_in, fan_out):
        bound = 1.0 / (fan_in ** 0.5)
        w = jax.random.uniform(kw, (fan_out, fan_in), jnp.float32, -bound, bound)
        b = jax.random.uniform(kb, (fan_out,), jnp.float32, -bound, bound)
        return w, b

    w1, b1 = lin(ks[0], ks[1], 8, 6)
    w2, b2 = lin(ks[2], ks[3], 6, 4)
    w3, b3 = lin(ks[4], ks[5], 4, 1)
    return {"w1": w1, "b1": b1, "w2": w2, "b2": b2, "w3": w3, "b3": b3}


def reference_forward(x, params):
    hp = lax.Precision.HIGHEST
    h = jax.nn.sigmoid(jnp.dot(x, params["w1"].T, precision=hp) + params["b1"])
    h = jax.nn.sigmoid(jnp.dot(h, params["w2"].T, precision=hp) + params["b2"])
    return jax.nn.sigmoid(jnp.dot(h, params["w3"].T, precision=hp) + params["b3"])


if __name__ == "__main__":
    key = jax.random.PRNGKey(0)
    k_x, k_p = jax.random.split(key)
    params = init_params(k_p)

    # Small demo batch (forward implies (B, 8) inputs): single full block.
    B = 16
    x = jax.random.normal(k_x, (B, 8), dtype=jnp.float32)
    out = jax.block_until_ready(model_c_forward(x, params))
    ref = reference_forward(x, params)
    assert out.shape == (B, 1), out.shape
    assert jnp.allclose(out, ref, atol=1e-5, rtol=1e-5), "mismatch vs reference"

    # Multi-block batch grid with a partial trailing block (3 tiles of 128).
    B2 = 300
    x2 = jax.random.normal(jax.random.PRNGKey(1), (B2, 8), dtype=jnp.float32)
    out2 = jax.block_until_ready(model_c_forward(x2, params, tb=128))
    ref2 = reference_forward(x2, params)
    assert out2.shape == (B2, 1), out2.shape
    assert jnp.allclose(out2, ref2, atol=1e-5, rtol=1e-5), "tiled mismatch vs reference"

    print("KERNEL_OK")
</pallas_src>

<mosaic_0001>
module attributes {stable_mosaic.version = 11 : i64} {
  func.func @mlp_kernel(%arg0: i32, %arg1: memref<16x8xf32, #tpu.memory_space<vmem>>, %arg2: memref<8x32xf32, #tpu.memory_space<vmem>>, %arg3: memref<1x16xf32, #tpu.memory_space<vmem>>) attributes {dimension_semantics = [#tpu.dimension_semantics<parallel>], iteration_bounds = array<i64: 1>, scalar_prefetch = 0 : i64, scratch_operands = 0 : i64, tpu.core_type = #tpu.core_type<tc>, window_params = [{transform_indices = @transform_0, window_bounds = array<i64: 16, 8>}, {pipeline_mode = #tpu.pipeline_mode<synchronous>, transform_indices = @transform_1, window_bounds = array<i64: 8, 32>}, {transform_indices = @transform_2, window_bounds = array<i64: 1, 16>}]} {
    %c0 = arith.constant 0 : index
    %c0_0 = arith.constant 0 : index
    %0 = vector.load %arg1[%c0, %c0_0] : memref<16x8xf32, #tpu.memory_space<vmem>>, vector<16x8xf32>
    %c0_1 = arith.constant 0 : index
    %c0_2 = arith.constant 0 : index
    %1 = vector.load %arg2[%c0_1, %c0_2] : memref<8x32xf32, #tpu.memory_space<vmem>>, vector<8x32xf32>
    %2 = vector.extract_strided_slice %1 {offsets = [0, 0], sizes = [8, 8], strides = [1, 1]} : vector<8x32xf32> to vector<8x8xf32>
    %3 = vector.extract_strided_slice %1 {offsets = [0, 8], sizes = [8, 8], strides = [1, 1]} : vector<8x32xf32> to vector<8x8xf32>
    %4 = vector.extract_strided_slice %1 {offsets = [0, 16], sizes = [1, 8], strides = [1, 1]} : vector<8x32xf32> to vector<1x8xf32>
    %5 = vector.extract_strided_slice %1 {offsets = [0, 24], sizes = [8, 1], strides = [1, 1]} : vector<8x32xf32> to vector<8x1xf32>
    %6 = vector.extract_strided_slice %1 {offsets = [0, 25], sizes = [8, 1], strides = [1, 1]} : vector<8x32xf32> to vector<8x1xf32>
    %7 = vector.extract_strided_slice %1 {offsets = [0, 26], sizes = [1, 1], strides = [1, 1]} : vector<8x32xf32> to vector<1x1xf32>
    %cst = arith.constant dense<0.000000e+00> : vector<8x16xf32>
    %8 = tpu.matmul %2, %0, %cst {dimension_numbers = #tpu.dot_dimension_numbers<[1], [1], [0], [0], [0, 0, 1, 0], [], []>, precision = #tpu.contract_precision<fp32>} : vector<8x8xf32>, vector<16x8xf32>, vector<8x16xf32> -> vector<8x16xf32>
    %9 = vector.broadcast %5 : vector<8x1xf32> to vector<8x16xf32>
    %10 = arith.addf %8, %9 : vector<8x16xf32>
    %11 = arith.negf %10 : vector<8x16xf32>
    %12 = math.exp %11 : vector<8x16xf32>
    %cst_3 = arith.constant 1.000000e+00 : f32
    %13 = vector.broadcast %cst_3 : f32 to vector<8x16xf32>
    %14 = arith.addf %13, %12 : vector<8x16xf32>
    %15 = arith.divf %13, %14 : vector<8x16xf32>
    %cst_4 = arith.constant dense<0.000000e+00> : vector<8x16xf32>
    %16 = tpu.matmul %3, %15, %cst_4 {dimension_numbers = #tpu.dot_dimension_numbers<[1], [0], [0], [1], [0, 0, 1, 1], [], []>, precision = #tpu.contract_precision<fp32>} : vector<8x8xf32>, vector<8x16xf32>, vector<8x16xf32> -> vector<8x16xf32>
    %17 = vector.broadcast %6 : vector<8x1xf32> to vector<8x16xf32>
    %18 = arith.addf %16, %17 : vector<8x16xf32>
    %19 = arith.negf %18 : vector<8x16xf32>
    %20 = math.exp %19 : vector<8x16xf32>
    %cst_5 = arith.constant 1.000000e+00 : f32
    %21 = vector.broadcast %cst_5 : f32 to vector<8x16xf32>
    %22 = arith.addf %21, %20 : vector<8x16xf32>
    %23 = arith.divf %21, %22 : vector<8x16xf32>
    %cst_6 = arith.constant dense<0.000000e+00> : vector<1x16xf32>
    %24 = tpu.matmul %4, %23, %cst_6 {dimension_numbers = #tpu.dot_dimension_numbers<[1], [0], [0], [1], [0, 0, 1, 1], [], []>, precision = #tpu.contract_precision<fp32>} : vector<1x8xf32>, vector<8x16xf32>, vector<1x16xf32> -> vector<1x16xf32>
    %25 = vector.broadcast %7 : vector<1x1xf32> to vector<1x16xf32>
    %26 = arith.addf %24, %25 : vector<1x16xf32>
    %27 = arith.negf %26 : vector<1x16xf32>
    %28 = math.exp %27 : vector<1x16xf32>
    %cst_7 = arith.constant 1.000000e+00 : f32
    %29 = vector.broadcast %cst_7 : f32 to vector<1x16xf32>
    %30 = arith.addf %29, %28 : vector<1x16xf32>
    %31 = arith.divf %29, %30 : vector<1x16xf32>
    %c0_8 = arith.constant 0 : index
    %c0_9 = arith.constant 0 : index
    %32 = vector.load %arg3[%c0_8, %c0_9] : memref<1x16xf32, #tpu.memory_space<vmem>>, vector<1x16xf32>
    tpu.vector_store %arg3[%c0_8, %c0_9], %31 {strides = array<i32>} : memref<1x16xf32, #tpu.memory_space<vmem>>, vector<1x16xf32>,
    return
  }
  func.func @transform_0(%arg0: i32) -> (i32, i32) {
    %c0_i32 = arith.constant 0 : i32
    %c0_i32_0 = arith.constant 0 : i32
    return %arg0, %c0_i32 : i32, i32
  }
  func.func @transform_1(%arg0: i32) -> (i32, i32) {
    %c0_i32 = arith.constant 0 : i32
    %c0_i32_0 = arith.constant 0 : i32
    %c0_i32_1 = arith.constant 0 : i32
    return %c0_i32, %c0_i32_0 : i32, i32
  }
  func.func @transform_2(%arg0: i32) -> (i32, i32) {
    %c0_i32 = arith.constant 0 : i32
    %c0_i32_0 = arith.constant 0 : i32
    return %c0_i32, %arg0 : i32, i32
  }
}

</mosaic_0001>

<llo_original>
// kernel: tpu_custom_call.1
$region0: #{tpu_custom_call.1}
  #allocation0 [shape = 'u32[]', space=smem, size = 0x4, offset = 0x4, fixed_abs, tag = 'smem constant byte address 0x4 - core index']
  #allocation1 [shape = 'u32[72,128]{1,0:T(1,128)}', space=vmem, size = 0x9000, scoped, tag = 'internal scratch']
  %s0 = inlined_call_operand.vmem [shape: f32[16,8], index: 0, kind: input, shape index: {}]
  %s1 = inlined_call_operand.vmem [shape: f32[8,32], index: 1, kind: input, shape index: {}]
  %s2 = inlined_call_operand.hbm [shape: f32[1,16], index: 2, kind: output, shape index: {}]
  %s3 = sld [smem:[#allocation0]]
  $region18: #{tpu_custom_call.1} parent=0
    _
  %s5 = ssub.s32 1, %s3
  %s6 = scalar_select 0, %s5, %s3
  $region1: #{tpu_custom_call.1} parent=0
    #allocation2 [shape = 'u8[512]{0}', space=vmem, size = 0x400, scoped, tag = 'output window, operand 0, single buffered']
    #allocation3 [shape = 's32[1]{0}', space=sflag, size = 0x4, scoped, tag = 'scoped memory for tpu_custom_call.1']
    %7 = vsyncpa [#allocation3], 0
    // Predicated region
    $region2: #{tpu_custom_call.1} parent=1 // pred_check
      _
    $region3: #{tpu_custom_call.1} parent=1 // pred_check_branch
      %9 = sbr.rel (0) target = $region5
    $region4: #{tpu_custom_call.1} parent=1 // pred_region
      _
    $region5: #{tpu_custom_call.1} parent=1 // pred_fallthru
      _
    // Predicated region
    $region6: #{tpu_custom_call.1} parent=1 // pred_check
      _
    $region7: #{tpu_custom_call.1} parent=1 // pred_check_branch
      %11 = sbr.rel (0) target = $region9
    $region8: #{tpu_custom_call.1} parent=1 // pred_region
      _
    $region9: #{tpu_custom_call.1} parent=1 // pred_fallthru
      _
    %v12 = vld [vmem:[%s0] sm:$0xff]
    %v13 = vld [vmem:[%s0 + $0x8] sm:$0xff]
    %v14 = vld [vmem:[%s1] sm:$0xff]
    %16 = vset.pattern.permute.xlu0 24
    %17 = vperm.xlu0 %16, %v14
    %v18 = vpop.permute.xlu0 %17
    %vm20 = vcmask 64512
    %v21 = vsel %vm20, %v14, 0
    %v24 = vsel %vm20, %v12, 0
    %v27 = vsel %vm20, %v13, 0
    %29 = vmatpush.xpose.msra.mxu0 0.0
    %30 = vmatpush.xpose.msra.mxu0 0.0
    %31 = vmatpush.xpose.msra.mxu0 0.0
    %32 = vmatpush.xpose.msra.mxu0 0.0
    %33 = vmatpush.xpose.msra.mxu0 0.0
    %34 = vmatpush.xpose.msra.mxu0 0.0
    %35 = vmatpush.xpose.msra.mxu0 0.0
    %36 = vmatpush.xpose.msra.mxu0 0.0
    %37 = vmatpush.xpose.msra.mxu0 0.0
    %38 = vmatpush.xpose.msra.mxu0 0.0
    %39 = vmatpush.xpose.msra.mxu0 0.0
    %40 = vmatpush.xpose.msra.mxu0 0.0
    %41 = vmatpush.xpose.msra.mxu0 0.0
    %42 = vmatpush.xpose.msra.mxu0 0.0
    %v43 = vand.u32 %v27, 4294901760
    %44 = vmatpush.xpose.msra.mxu0 %v43
    %v45 = vand.u32 %v24, 4294901760
    %46 = vmatpush.xpose.msra.mxu0 %v45
    %v47 = vand.u32 %v21, 4294901760
    %v48 = vsub.f32 %v21, %v47
    %v49 = vand.u32 %v48, 4294901760
    %v50 = vsub.f32 %v48, %v49
    %v51 = vand.u32 %v50, 4294901760
    %52 = vmatmul.f32.gmra.mxu0 %v51
    %v53 = vpop.f32.mrf.mxu0
    %v54 = vadd.f32 %v18, %v53
    %55 = vdwg.mxu0
    %56 = vmatpush.xpose.msra.mxu0 0.0
    %57 = vmatpush.xpose.msra.mxu0 0.0
    %58 = vmatpush.xpose.msra.mxu0 0.0
    %59 = vmatpush.xpose.msra.mxu0 0.0
    %60 = vmatpush.xpose.msra.mxu0 0.0
    %61 = vmatpush.xpose.msra.mxu0 0.0
    %62 = vmatpush.xpose.msra.mxu0 0.0
    %63 = vmatpush.xpose.msra.mxu0 0.0
    %64 = vmatpush.xpose.msra.mxu0 0.0
    %65 = vmatpush.xpose.msra.mxu0 0.0
    %66 = vmatpush.xpose.msra.mxu0 0.0
    %67 = vmatpush.xpose.msra.mxu0 0.0
    %68 = vmatpush.xpose.msra.mxu0 0.0
    %69 = vmatpush.xpose.msra.mxu0 0.0
    %v70 = vand.u32 %v27, 4294901760
    %v71 = vsub.f32 %v27, %v70
    %v72 = vand.u32 %v71, 4294901760
    %v73 = vsub.f32 %v71, %v72
    %v74 = vand.u32 %v73, 4294901760
    %75 = vmatpush.xpose.msra.mxu0 %v74
    %v76 = vand.u32 %v24, 4294901760
    %v77 = vsub.f32 %v24, %v76
    %v78 = vand.u32 %v77, 4294901760
    %v79 = vsub.f32 %v77, %v78
    %v80 = vand.u32 %v79, 4294901760
    %81 = vmatpush.xpose.msra.mxu0 %v80
    %v82 = vand.u32 %v21, 4294901760
    %83 = vmatmul.f32.gmra.mxu0 %v82
    %v84 = vpop.f32.mrf.mxu0
    %v85 = vadd.f32 %v54, %v84
    %86 = vdwg.mxu0
    %87 = vmatpush.xpose.msra.mxu0 0.0
    %88 = vmatpush.xpose.msra.mxu0 0.0
    %89 = vmatpush.xpose.msra.mxu0 0.0
    %90 = vmatpush.xpose.msra.mxu0 0.0
    %91 = vmatpush.xpose.msra.mxu0 0.0
    %92 = vmatpush.xpose.msra.mxu0 0.0
    %93 = vmatpush.xpose.msra.mxu0 0.0
    %94 = vmatpush.xpose.msra.mxu0 0.0
    %95 = vmatpush.xpose.msra.mxu0 0.0
    %96 = vmatpush.xpose.msra.mxu0 0.0
    %97 = vmatpush.xpose.msra.mxu0 0.0
    %98 = vmatpush.xpose.msra.mxu0 0.0
    %99 = vmatpush.xpose.msra.mxu0 0.0
    %100 = vmatpush.xpose.msra.mxu0 0.0
    %v101 = vand.u32 %v27, 4294901760
    %v102 = vsub.f32 %v27, %v101
    %103 = vmatpush.xpose.msra.mxu0 %v102
    %v104 = vand.u32 %v24, 4294901760
    %v105 = vsub.f32 %v24, %v104
    %106 = vmatpush.xpose.msra.mxu0 %v105
    %v107 = vand.u32 %v21, 4294901760
    %v108 = vsub.f32 %v21, %v107
    %109 = vmatmul.f32.gmra.mxu0 %v108
    %v110 = vpop.f32.mrf.mxu0
    %v111 = vadd.f32 %v85, %v110
    %112 = vdwg.mxu0
    %113 = vmatpush.xpose.msra.mxu0 0.0
    %114 = vmatpush.xpose.msra.mxu0 0.0
    %115 = vmatpush.xpose.msra.mxu0 0.0
    %116 = vmatpush.xpose.msra.mxu0 0.0
    %117 = vmatpush.xpose.msra.mxu0 0.0
    %118 = vmatpush.xpose.msra.mxu0 0.0
    %119 = vmatpush.xpose.msra.mxu0 0.0
    %120 = vmatpush.xpose.msra.mxu0 0.0
    %121 = vmatpush.xpose.msra.mxu0 0.0
    %122 = vmatpush.xpose.msra.mxu0 0.0
    %123 = vmatpush.xpose.msra.mxu0 0.0
    %124 = vmatpush.xpose.msra.mxu0 0.0
    %125 = vmatpush.xpose.msra.mxu0 0.0
    %126 = vmatpush.xpose.msra.mxu0 0.0
    %v127 = vand.u32 %v27, 4294901760
    %128 = vmatpush.xpose.msra.mxu0 %v127
    %v129 = vand.u32 %v24, 4294901760
    %130 = vmatpush.xpose.msra.mxu0 %v129
    %v131 = vand.u32 %v21, 4294901760
    %v132 = vsub.f32 %v21, %v131
    %v133 = vand.u32 %v132, 4294901760
    %134 = vmatmul.f32.gmra.mxu0 %v133
    %v135 = vpop.f32.mrf.mxu0
    %v136 = vadd.f32 %v111, %v135
    %137 = vdwg.mxu0
    %138 = vmatpush.xpose.msra.mxu0 0.0
    %139 = vmatpush.xpose.msra.mxu0 0.0
    %140 = vmatpush.xpose.msra.mxu0 0.0
    %141 = vmatpush.xpose.msra.mxu0 0.0
    %142 = vmatpush.xpose.msra.mxu0 0.0
    %143 = vmatpush.xpose.msra.mxu0 0.0
    %144 = vmatpush.xpose.msra.mxu0 0.0
    %145 = vmatpush.xpose.msra.mxu0 0.0
    %146 = vmatpush.xpose.msra.mxu0 0.0
    %147 = vmatpush.xpose.msra.mxu0 0.0
    %148 = vmatpush.xpose.msra.mxu0 0.0
    %149 = vmatpush.xpose.msra.mxu0 0.0
    %150 = vmatpush.xpose.msra.mxu0 0.0
    %151 = vmatpush.xpose.msra.mxu0 0.0
    %v152 = vand.u32 %v27, 4294901760
    %v153 = vsub.f32 %v27, %v152
    %v154 = vand.u32 %v153, 4294901760
    %155 = vmatpush.xpose.msra.mxu0 %v154
    %v156 = vand.u32 %v24, 4294901760
    %v157 = vsub.f32 %v24, %v156
    %v158 = vand.u32 %v157, 4294901760
    %159 = vmatpush.xpose.msra.mxu0 %v158
    %v160 = vand.u32 %v21, 4294901760
    %161 = vmatmul.f32.gmra.mxu0 %v160
    %v162 = vpop.f32.mrf.mxu0
    %v163 = vadd.f32 %v136, %v162
    %164 = vdwg.mxu0
    %165 = vmatpush.xpose.msra.mxu0 0.0
    %166 = vmatpush.xpose.msra.mxu0 0.0
    %167 = vmatpush.xpose.msra.mxu0 0.0
    %168 = vmatpush.xpose.msra.mxu0 0.0
    %169 = vmatpush.xpose.msra.mxu0 0.0
    %170 = vmatpush.xpose.msra.mxu0 0.0
    %171 = vmatpush.xpose.msra.mxu0 0.0
    %172 = vmatpush.xpose.msra.mxu0 0.0
    %173 = vmatpush.xpose.msra.mxu0 0.0
    %174 = vmatpush.xpose.msra.mxu0 0.0
    %175 = vmatpush.xpose.msra.mxu0 0.0
    %176 = vmatpush.xpose.msra.mxu0 0.0
    %177 = vmatpush.xpose.msra.mxu0 0.0
    %178 = vmatpush.xpose.msra.mxu0 0.0
    %v179 = vand.u32 %v27, 4294901760
    %180 = vmatpush.xpose.msra.mxu0 %v179
    %v181 = vand.u32 %v24, 4294901760
    %182 = vmatpush.xpose.msra.mxu0 %v181
    %v183 = vand.u32 %v21, 4294901760
    %184 = vmatmul.f32.gmra.mxu0 %v183
    %v185 = vpop.f32.mrf.mxu0
    %v186 = vadd.f32 %v163, %v185
    %187 = vdwg.mxu0
    %v188 = vxor.u32 %v186, 2147483648
    %v189 = vmul.f32 %v188, 1.442695
    %v190 = vpow.pop %v189
    %v191 = vadd.f32 %v190, 1.0
    %v192 = vrcp.pop %v191
    %v193 = vmul.f32 %v191, %v192
    %v194 = vsub.f32 1.0, %v193
    %v195 = vmul.f32 %v192, %v194
    %v196 = vadd.f32 %v192, %v195
    %vm197 = vweird.f32 %v191
    %vm198 = vweird.f32 %v192
    %vm199 = vmor %vm197, %vm198
    %v200 = vsel %vm199, %v192, %v196
    %v201 = vand.u32 2147483647, %v191
    %vm202 = vcmp.eq.f32.partialorder %v201, 8.507059e+37
    %v203 = vand.u32 %v191, 2147483648
    %v204 = vor.u32 1.1754944e-38, %v203
    %v205 = vsel %vm202, %v204, %v200
    %v206 = vmul.f32 1.0, %v205
    %207 = vset.pattern.permute.xlu0 25
    %208 = vperm.xlu0 %207, %v14
    %v209 = vpop.permute.xlu0 %208
    %211 = vrot.lane.b32.xlu0 %v14, 120
    %v212 = vpop.permute.xlu0 %211
    %v213 = vsel %vm20, %v212, 0
    %215 = vmatpush.msra.mxu0 0.0
    %216 = vmatpush.msra.mxu0 0.0
    %217 = vmatpush.msra.mxu0 0.0
    %218 = vmatpush.msra.mxu0 0.0
    %219 = vmatpush.msra.mxu0 0.0
    %220 = vmatpush.msra.mxu0 0.0
    %221 = vmatpush.msra.mxu0 0.0
    %222 = vmatpush.msra.mxu0 0.0
    %223 = vmatpush.msra.mxu0 0.0
    %224 = vmatpush.msra.mxu0 0.0
    %225 = vmatpush.msra.mxu0 0.0
    %226 = vmatpush.msra.mxu0 0.0
    %227 = vmatpush.msra.mxu0 0.0
    %228 = vmatpush.msra.mxu0 0.0
    %229 = vmatpush.msra.mxu0 0.0
    %v230 = vand.u32 %v206, 4294901760
    %231 = vmatpush.msra.mxu0 %v230
    %v232 = vand.u32 %v213, 4294901760
    %v233 = vsub.f32 %v213, %v232
    %v234 = vand.u32 %v233, 4294901760
    %v235 = vsub.f32 %v233, %v234
    %v236 = vand.u32 %v235, 4294901760
    %237 = vmatmul.f32.gmra.mxu0 %v236
    %v238 = vpop.f32.mrf.mxu0
    %v239 = vadd.f32 %v209, %v238
    %240 = vdwg.mxu0
    %241 = vmatpush.msra.mxu0 0.0
    %242 = vmatpush.msra.mxu0 0.0
    %243 = vmatpush.msra.mxu0 0.0
    %244 = vmatpush.msra.mxu0 0.0
    %245 = vmatpush.msra.mxu0 0.0
    %246 = vmatpush.msra.mxu0 0.0
    %247 = vmatpush.msra.mxu0 0.0
    %248 = vmatpush.msra.mxu0 0.0
    %249 = vmatpush.msra.mxu0 0.0
    %250 = vmatpush.msra.mxu0 0.0
    %251 = vmatpush.msra.mxu0 0.0
    %252 = vmatpush.msra.mxu0 0.0
    %253 = vmatpush.msra.mxu0 0.0
    %254 = vmatpush.msra.mxu0 0.0
    %255 = vmatpush.msra.mxu0 0.0
    %v256 = vand.u32 %v206, 4294901760
    %v257 = vsub.f32 %v206, %v256
    %v258 = vand.u32 %v257, 4294901760
    %v259 = vsub.f32 %v257, %v258
    %v260 = vand.u32 %v259, 4294901760
    %261 = vmatpush.msra.mxu0 %v260
    %v262 = vand.u32 %v213, 4294901760
    %263 = vmatmul.f32.gmra.mxu0 %v262
    %v264 = vpop.f32.mrf.mxu0
    %v265 = vadd.f32 %v239, %v264
    %266 = vdwg.mxu0
    %267 = vmatpush.msra.mxu0 0.0
    %268 = vmatpush.msra.mxu0 0.0
    %269 = vmatpush.msra.mxu0 0.0
    %270 = vmatpush.msra.mxu0 0.0
    %271 = vmatpush.msra.mxu0 0.0
    %272 = vmatpush.msra.mxu0 0.0
    %273 = vmatpush.msra.mxu0 0.0
    %274 = vmatpush.msra.mxu0 0.0
    %275 = vmatpush.msra.mxu0 0.0
    %276 = vmatpush.msra.mxu0 0.0
    %277 = vmatpush.msra.mxu0 0.0
    %278 = vmatpush.msra.mxu0 0.0
    %279 = vmatpush.msra.mxu0 0.0
    %280 = vmatpush.msra.mxu0 0.0
    %281 = vmatpush.msra.mxu0 0.0
    %v282 = vand.u32 %v206, 4294901760
    %v283 = vsub.f32 %v206, %v282
    %284 = vmatpush.msra.mxu0 %v283
    %v285 = vand.u32 %v213, 4294901760
    %v286 = vsub.f32 %v213, %v285
    %287 = vmatmul.f32.gmra.mxu0 %v286
    %v288 = vpop.f32.mrf.mxu0
    %v289 = vadd.f32 %v265, %v288
    %290 = vdwg.mxu0
    %291 = vmatpush.msra.mxu0 0.0
    %292 = vmatpush.msra.mxu0 0.0
    %293 = vmatpush.msra.mxu0 0.0
    %294 = vmatpush.msra.mxu0 0.0
    %295 = vmatpush.msra.mxu0 0.0
    %296 = vmatpush.msra.mxu0 0.0
    %297 = vmatpush.msra.mxu0 0.0
    %298 = vmatpush.msra.mxu0 0.0
    %299 = vmatpush.msra.mxu0 0.0
    %300 = vmatpush.msra.mxu0 0.0
    %301 = vmatpush.msra.mxu0 0.0
    %302 = vmatpush.msra.mxu0 0.0
    %303 = vmatpush.msra.mxu0 0.0
    %304 = vmatpush.msra.mxu0 0.0
    %305 = vmatpush.msra.mxu0 0.0
    %v306 = vand.u32 %v206, 4294901760
    %307 = vmatpush.msra.mxu0 %v306
    %v308 = vand.u32 %v213, 4294901760
    %v309 = vsub.f32 %v213, %v308
    %v310 = vand.u32 %v309, 4294901760
    %311 = vmatmul.f32.gmra.mxu0 %v310
    %v312 = vpop.f32.mrf.mxu0
    %v313 = vadd.f32 %v289, %v312
    %314 = vdwg.mxu0
    %315 = vmatpush.msra.mxu0 0.0
    %316 = vmatpush.msra.mxu0 0.0
    %317 = vmatpush.msra.mxu0 0.0
    %318 = vmatpush.msra.mxu0 0.0
    %319 = vmatpush.msra.mxu0 0.0
    %320 = vmatpush.msra.mxu0 0.0
    %321 = vmatpush.msra.mxu0 0.0
    %322 = vmatpush.msra.mxu0 0.0
    %323 = vmatpush.msra.mxu0 0.0
    %324 = vmatpush.msra.mxu0 0.0
    %325 = vmatpush.msra.mxu0 0.0
    %326 = vmatpush.msra.mxu0 0.0
    %327 = vmatpush.msra.mxu0 0.0
    %328 = vmatpush.msra.mxu0 0.0
    %329 = vmatpush.msra.mxu0 0.0
    %v330 = vand.u32 %v206, 4294901760
    %v331 = vsub.f32 %v206, %v330
    %v332 = vand.u32 %v331, 4294901760
    %333 = vmatpush.msra.mxu0 %v332
    %v334 = vand.u32 %v213, 4294901760
    %335 = vmatmul.f32.gmra.mxu0 %v334
    %v336 = vpop.f32.mrf.mxu0
    %v337 = vadd.f32 %v313, %v336
    %338 = vdwg.mxu0
    %339 = vmatpush.msra.mxu0 0.0
    %340 = vmatpush.msra.mxu0 0.0
    %341 = vmatpush.msra.mxu0 0.0
    %342 = vmatpush.msra.mxu0 0.0
    %343 = vmatpush.msra.mxu0 0.0
    %344 = vmatpush.msra.mxu0 0.0
    %345 = vmatpush.msra.mxu0 0.0
    %346 = vmatpush.msra.mxu0 0.0
    %347 = vmatpush.msra.mxu0 0.0
    %348 = vmatpush.msra.mxu0 0.0
    %349 = vmatpush.msra.mxu0 0.0
    %350 = vmatpush.msra.mxu0 0.0
    %351 = vmatpush.msra.mxu0 0.0
    %352 = vmatpush.msra.mxu0 0.0
    %353 = vmatpush.msra.mxu0 0.0
    %v354 = vand.u32 %v206, 4294901760
    %355 = vmatpush.msra.mxu0 %v354
    %v356 = vand.u32 %v213, 4294901760
    %357 = vmatmul.f32.gmra.mxu0 %v356
    %v358 = vpop.f32.mrf.mxu0
    %v359 = vadd.f32 %v337, %v358
    %360 = vdwg.mxu0
    %v361 = vxor.u32 %v359, 2147483648
    %v362 = vmul.f32 %v361, 1.442695
    %v363 = vpow.pop %v362
    %v364 = vadd.f32 %v363, 1.0
    %v365 = vrcp.pop %v364
    %v366 = vmul.f32 %v364, %v365
    %v367 = vsub.f32 1.0, %v366
    %v368 = vmul.f32 %v365, %v367
    %v369 = vadd.f32 %v365, %v368
    %vm370 = vweird.f32 %v364
    %vm371 = vweird.f32 %v365
    %vm372 = vmor %vm370, %vm371
    %v373 = vsel %vm372, %v365, %v369
    %v374 = vand.u32 2147483647, %v364
    %vm375 = vcmp.eq.f32.partialorder %v374, 8.507059e+37
    %v376 = vand.u32 %v364, 2147483648
    %v377 = vor.u32 1.1754944e-38, %v376
    %v378 = vsel %vm375, %v377, %v373
    %v379 = vmul.f32 1.0, %v378
    %380 = vset.pattern.permute.xlu0 26
    %381 = vperm.xlu0 %380, %v14
    %v382 = vpop.permute.xlu0 %381
    %384 = vrot.lane.b32.xlu0 %v14, 112
    %v385 = vpop.permute.xlu0 %384
    %v386 = vsel %vm20, %v385, 0
    %388 = vmatpush.msra.mxu0 0.0
    %389 = vmatpush.msra.mxu0 0.0
    %390 = vmatpush.msra.mxu0 0.0
    %391 = vmatpush.msra.mxu0 0.0
    %392 = vmatpush.msra.mxu0 0.0
    %393 = vmatpush.msra.mxu0 0.0
    %394 = vmatpush.msra.mxu0 0.0
    %395 = vmatpush.msra.mxu0 0.0
    %396 = vmatpush.msra.mxu0 0.0
    %397 = vmatpush.msra.mxu0 0.0
    %398 = vmatpush.msra.mxu0 0.0
    %399 = vmatpush.msra.mxu0 0.0
    %400 = vmatpush.msra.mxu0 0.0
    %401 = vmatpush.msra.mxu0 0.0
    %402 = vmatpush.msra.mxu0 0.0
    %v403 = vand.u32 %v379, 4294901760
    %404 = vmatpush.msra.mxu0 %v403
    %v405 = vand.u32 %v386, 4294901760
    %v406 = vsub.f32 %v386, %v405
    %v407 = vand.u32 %v406, 4294901760
    %v408 = vsub.f32 %v406, %v407
    %v409 = vand.u32 %v408, 4294901760
    %410 = vmatmul.f32.gmra.mxu0 %v409
    %v411 = vpop.f32.mrf.mxu0
    %v412 = vadd.f32 %v382, %v411
    %413 = vdwg.mxu0
    %414 = vmatpush.msra.mxu0 0.0
    %415 = vmatpush.msra.mxu0 0.0
    %416 = vmatpush.msra.mxu0 0.0
    %417 = vmatpush.msra.mxu0 0.0
    %418 = vmatpush.msra.mxu0 0.0
    %419 = vmatpush.msra.mxu0 0.0
    %420 = vmatpush.msra.mxu0 0.0
    %421 = vmatpush.msra.mxu0 0.0
    %422 = vmatpush.msra.mxu0 0.0
    %423 = vmatpush.msra.mxu0 0.0
    %424 = vmatpush.msra.mxu0 0.0
    %425 = vmatpush.msra.mxu0 0.0
    %426 = vmatpush.msra.mxu0 0.0
    %427 = vmatpush.msra.mxu0 0.0
    %428 = vmatpush.msra.mxu0 0.0
    %v429 = vand.u32 %v379, 4294901760
    %v430 = vsub.f32 %v379, %v429
    %v431 = vand.u32 %v430, 4294901760
    %v432 = vsub.f32 %v430, %v431
    %v433 = vand.u32 %v432, 4294901760
    %434 = vmatpush.msra.mxu0 %v433
    %v435 = vand.u32 %v386, 4294901760
    %436 = vmatmul.f32.gmra.mxu0 %v435
    %v437 = vpop.f32.mrf.mxu0
    %v438 = vadd.f32 %v412, %v437
    %439 = vdwg.mxu0
    %440 = vmatpush.msra.mxu0 0.0
    %441 = vmatpush.msra.mxu0 0.0
    %442 = vmatpush.msra.mxu0 0.0
    %443 = vmatpush.msra.mxu0 0.0
    %444 = vmatpush.msra.mxu0 0.0
    %445 = vmatpush.msra.mxu0 0.0
    %446 = vmatpush.msra.mxu0 0.0
    %447 = vmatpush.msra.mxu0 0.0
    %448 = vmatpush.msra.mxu0 0.0
    %449 = vmatpush.msra.mxu0 0.0
    %450 = vmatpush.msra.mxu0 0.0
    %451 = vmatpush.msra.mxu0 0.0
    %452 = vmatpush.msra.mxu0 0.0
    %453 = vmatpush.msra.mxu0 0.0
    %454 = vmatpush.msra.mxu0 0.0
    %v455 = vand.u32 %v379, 4294901760
    %v456 = vsub.f32 %v379, %v455
    %457 = vmatpush.msra.mxu0 %v456
    %v458 = vand.u32 %v386, 4294901760
    %v459 = vsub.f32 %v386, %v458
    %460 = vmatmul.f32.gmra.mxu0 %v459
    %v461 = vpop.f32.mrf.mxu0
    %v462 = vadd.f32 %v438, %v461
    %463 = vdwg.mxu0
    %464 = vmatpush.msra.mxu0 0.0
    %465 = vmatpush.msra.mxu0 0.0
    %466 = vmatpush.msra.mxu0 0.0
    %467 = vmatpush.msra.mxu0 0.0
    %468 = vmatpush.msra.mxu0 0.0
    %469 = vmatpush.msra.mxu0 0.0
    %470 = vmatpush.msra.mxu0 0.0
    %471 = vmatpush.msra.mxu0 0.0
    %472 = vmatpush.msra.mxu0 0.0
    %473 = vmatpush.msra.mxu0 0.0
    %474 = vmatpush.msra.mxu0 0.0
    %475 = vmatpush.msra.mxu0 0.0
    %476 = vmatpush.msra.mxu0 0.0
    %477 = vmatpush.msra.mxu0 0.0
    %478 = vmatpush.msra.mxu0 0.0
    %v479 = vand.u32 %v379, 4294901760
    %480 = vmatpush.msra.mxu0 %v479
    %v481 = vand.u32 %v386, 4294901760
    %v482 = vsub.f32 %v386, %v481
    %v483 = vand.u32 %v482, 4294901760
    %484 = vmatmul.f32.gmra.mxu0 %v483
    %v485 = vpop.f32.mrf.mxu0
    %v486 = vadd.f32 %v462, %v485
    %487 = vdwg.mxu0
    %488 = vmatpush.msra.mxu0 0.0
    %489 = vmatpush.msra.mxu0 0.0
    %490 = vmatpush.msra.mxu0 0.0
    %491 = vmatpush.msra.mxu0 0.0
    %492 = vmatpush.msra.mxu0 0.0
    %493 = vmatpush.msra.mxu0 0.0
    %494 = vmatpush.msra.mxu0 0.0
    %495 = vmatpush.msra.mxu0 0.0
    %496 = vmatpush.msra.mxu0 0.0
    %497 = vmatpush.msra.mxu0 0.0
    %498 = vmatpush.msra.mxu0 0.0
    %499 = vmatpush.msra.mxu0 0.0
    %500 = vmatpush.msra.mxu0 0.0
    %501 = vmatpush.msra.mxu0 0.0
    %502 = vmatpush.msra.mxu0 0.0
    %v503 = vand.u32 %v379, 4294901760
    %v504 = vsub.f32 %v379, %v503
    %v505 = vand.u32 %v504, 4294901760
    %506 = vmatpush.msra.mxu0 %v505
    %v507 = vand.u32 %v386, 4294901760
    %508 = vmatmul.f32.gmra.mxu0 %v507
    %v509 = vpop.f32.mrf.mxu0
    %v510 = vadd.f32 %v486, %v509
    %511 = vdwg.mxu0
    %512 = vmatpush.msra.mxu0 0.0
    %513 = vmatpush.msra.mxu0 0.0
    %514 = vmatpush.msra.mxu0 0.0
    %515 = vmatpush.msra.mxu0 0.0
    %516 = vmatpush.msra.mxu0 0.0
    %517 = vmatpush.msra.mxu0 0.0
    %518 = vmatpush.msra.mxu0 0.0
    %519 = vmatpush.msra.mxu0 0.0
    %520 = vmatpush.msra.mxu0 0.0
    %521 = vmatpush.msra.mxu0 0.0
    %522 = vmatpush.msra.mxu0 0.0
    %523 = vmatpush.msra.mxu0 0.0
    %524 = vmatpush.msra.mxu0 0.0
    %525 = vmatpush.msra.mxu0 0.0
    %526 = vmatpush.msra.mxu0 0.0
    %v527 = vand.u32 %v379, 4294901760
    %528 = vmatpush.msra.mxu0 %v527
    %v529 = vand.u32 %v386, 4294901760
    %530 = vmatmul.f32.gmra.mxu0 %v529
    %v531 = vpop.f32.mrf.mxu0
    %v532 = vadd.f32 %v510, %v531
    %533 = vdwg.mxu0
    %v534 = vxor.u32 %v532, 2147483648
    %v535 = vmul.f32 %v534, 1.442695
    %v536 = vpow.pop %v535
    %v537 = vadd.f32 %v536, 1.0
    %v538 = vrcp.pop %v537
    %v539 = vmul.f32 %v537, %v538
    %v540 = vsub.f32 1.0, %v539
    %v541 = vmul.f32 %v538, %v540
    %v542 = vadd.f32 %v538, %v541
    %vm543 = vweird.f32 %v537
    %vm544 = vweird.f32 %v538
    %vm545 = vmor %vm543, %vm544
    %v546 = vsel %vm545, %v538, %v542
    %v547 = vand.u32 2147483647, %v537
    %vm548 = vcmp.eq.f32.partialorder %v547, 8.507059e+37
    %v549 = vand.u32 %v537, 2147483648
    %v550 = vor.u32 1.1754944e-38, %v549
    %v551 = vsel %vm548, %v550, %v546
    %v552 = vmul.f32 1.0, %v551
    %vm553 = vcmask 122880
    %554 = vst.msk [vmem:[#allocation2] sm:$0x1] %vm553, %v552
    // Predicated region
    $region10: #{tpu_custom_call.1} parent=1 // pred_check
      _
    $region11: #{tpu_custom_call.1} parent=1 // pred_check_branch
      %556 = sbr.rel (0) target = $region13
    $region12: #{tpu_custom_call.1} parent=1 // pred_region
      %558 = vsyncadd [#allocation3], 0
      %s560 = sshll.u32 [#allocation2], 4
      %s561 = int_to_ptr.vmem [resolvable:$true] %s560
      %s562 = sshll.u32 %s2, 4
      %s563 = int_to_ptr.hbm [resolvable:$true] %s562
      %565 = dma.vmem_to_hbm [thread:$0]  %s561, 16, %s563, [#allocation3]
    $region13: #{tpu_custom_call.1} parent=1 // pred_fallthru
      _
    // Predicated region
    $region14: #{tpu_custom_call.1} parent=1 // pred_check
      _
    $region15: #{tpu_custom_call.1} parent=1 // pred_check_branch
      %567 = sbr.rel (0) target = $region17
    $region16: #{tpu_custom_call.1} parent=1 // pred_region
      %569 = dma.done [#allocation3], 16
    $region17: #{tpu_custom_call.1} parent=1 // pred_fallthru
      _
    %570 = vsyncpa [#allocation3], 1

</llo_original>
